<compile_context>
chip_gen: v5e
topology: v5e:2x2
jax: 0.10.0
libtpu: 0.0.40
codegen_flags: <defaults>
</compile_context>

<pallas_src>
import functools

import jax
import jax.numpy as jnp
from jax.experimental import pallas as pl
from jax.experimental.pallas import tpu as pltpu


def lstm_kernel(x_ref, len_ref, wih_ref, whh_ref, b_ref,
                bns_ref, bnb_ref, wfc_ref, bfc_ref, out_ref,
                *, seq_len, batch, hidden_size):
    T, B, H = seq_len, batch, hidden_size

    # ---- Input projection for ALL timesteps in one MXU call (off the
    # serial path):  (T*B, I) @ (I, 4H) + bias  -> (T*B, 4H).
    gates_in = (jnp.dot(x_ref[...], wih_ref[...],
                        preferred_element_type=jnp.float32)
                + b_ref[...])                                   # (T*B, 4H)

    whh = whh_ref[...]        # (H, 4H) -- loaded once, resident across steps
    lengths = len_ref[...]    # (B, 1) int32

    h = jnp.zeros((B, H), jnp.float32)
    c = jnp.zeros((B, H), jnp.float32)
    sel = jnp.zeros((B, H), jnp.float32)

    # ---- Recurrence: fully unrolled (T static & small). One MXU push per
    # step (h @ W_hh^T); the rest is VPU/EUP elementwise on single vregs.
    for t in range(T):
        g_in = gates_in[t * B:(t + 1) * B, :]      # sublane-aligned row slice
        gates = g_in + jnp.dot(h, whh, preferred_element_type=jnp.float32)

        i_g = jax.nn.sigmoid(gates[:, 0 * H:1 * H])
        f_g = jax.nn.sigmoid(gates[:, 1 * H:2 * H])
        g_g = jnp.tanh(gates[:, 2 * H:3 * H])
        o_g = jax.nn.sigmoid(gates[:, 3 * H:4 * H])

        c = f_g * c + i_g * g_g
        h = o_g * jnp.tanh(c)

        # Select hidden state at t == length-1 (the PyTorch gather).
        sel = jnp.where(lengths == (t + 1), h, sel)

    # ---- Eval-mode BatchNorm (pre-folded affine), dropout = identity,
    # then the final Linear (padded to 128 lane-dense output columns).
    h_bn = sel * bns_ref[...] + bnb_ref[...]
    out_ref[...] = (jnp.dot(h_bn, wfc_ref[...],
                            preferred_element_type=jnp.float32)
                    + bfc_ref[...]).astype(out_ref.dtype)


def lstm_forward(glove_vec, sent_lengths, params):
    """glove_vec: (T, B, I) f32, sent_lengths: (B,) i32 -> (B, 6) f32."""
    T, B, I = glove_vec.shape
    H = params["w_hh"].shape[1]          # w_hh: (4H, H)
    NCLS = params["w_fc"].shape[0]       # 6
    PAD = 128                            # lane-dense output width

    wih_t = params["w_ih"].T                                   # (I, 4H)
    whh_t = params["w_hh"].T                                   # (H, 4H)
    b = (params["b_ih"] + params["b_hh"]).reshape(1, 4 * H)

    # Fold eval-mode BatchNorm into an affine scale/shift.
    eps = 1e-5
    bn_scale = (params["bn_gamma"] /
                jnp.sqrt(params["bn_var"] + eps)).reshape(1, H)
    bn_shift = (params["bn_beta"] -
                params["bn_mean"] * bn_scale[0]).reshape(1, H)

    # Pad fc to 128 output columns -> unmasked lane-dense stores in-kernel.
    wfc_t = jnp.zeros((H, PAD), jnp.float32).at[:, :NCLS].set(
        params["w_fc"].T.astype(jnp.float32))
    bfc = jnp.zeros((1, PAD), jnp.float32).at[:, :NCLS].set(
        params["b_fc"].astype(jnp.float32))

    # Note: assumes 1 <= sent_lengths <= T (guaranteed by
    # pack_padded_sequence in the original module).
    lengths = sent_lengths.astype(jnp.int32).reshape(B, 1)
    x2d = glove_vec.reshape(T * B, I).astype(jnp.float32)

    kernel = functools.partial(lstm_kernel, seq_len=T, batch=B, hidden_size=H)
    vmem = pl.BlockSpec(memory_space=pltpu.MemorySpace.VMEM)

    out_pad = pl.pallas_call(
        kernel,
        out_shape=jax.ShapeDtypeStruct((B, PAD), jnp.float32),
        in_specs=[vmem] * 9,
        out_specs=vmem,
    )(x2d, lengths, wih_t, whh_t, b, bn_scale, bn_shift, wfc_t, bfc)

    return out_pad[:, :NCLS]


def lstm_reference(glove_vec, sent_lengths, params):
    """Pure-JAX reference (lax.scan) for validation."""
    H = params["w_hh"].shape[1]
    T, B, I = glove_vec.shape
    wih_t, whh_t = params["w_ih"].T, params["w_hh"].T
    b = params["b_ih"] + params["b_hh"]

    def step(carry, x_t):
        h, c = carry
        gates = x_t @ wih_t + h @ whh_t + b
        i_g = jax.nn.sigmoid(gates[:, 0 * H:1 * H])
        f_g = jax.nn.sigmoid(gates[:, 1 * H:2 * H])
        g_g = jnp.tanh(gates[:, 2 * H:3 * H])
        o_g = jax.nn.sigmoid(gates[:, 3 * H:4 * H])
        c = f_g * c + i_g * g_g
        h = o_g * jnp.tanh(c)
        return (h, c), h

    init = (jnp.zeros((B, H)), jnp.zeros((B, H)))
    _, hs = jax.lax.scan(step, init, glove_vec)                # (T, B, H)
    sel = hs[sent_lengths - 1, jnp.arange(B)]                  # (B, H)
    eps = 1e-5
    sel = ((sel - params["bn_mean"]) /
           jnp.sqrt(params["bn_var"] + eps) * params["bn_gamma"]
           + params["bn_beta"])
    return sel @ params["w_fc"].T + params["b_fc"]


if __name__ == "__main__":
    # Small config consistent with the module:
    #   input_size=16, hidden_size=32, num_layers=1, bidirectional=False,
    #   batchnormactive=True, dropout (eval) = identity.
    T, B, I, H = 8, 8, 16, 32

    key = jax.random.PRNGKey(0)
    ks = jax.random.split(key, 12)
    s = 0.1
    params = {
        "w_ih": jax.random.normal(ks[0], (4 * H, I), jnp.float32) * s,
        "w_hh": jax.random.normal(ks[1], (4 * H, H), jnp.float32) * s,
        "b_ih": jax.random.normal(ks[2], (4 * H,), jnp.float32) * s,
        "b_hh": jax.random.normal(ks[3], (4 * H,), jnp.float32) * s,
        "bn_gamma": 1.0 + 0.1 * jax.random.normal(ks[4], (H,), jnp.float32),
        "bn_beta": 0.1 * jax.random.normal(ks[5], (H,), jnp.float32),
        "bn_mean": 0.05 * jax.random.normal(ks[6], (H,), jnp.float32),
        "bn_var": 0.5 + jnp.abs(jax.random.normal(ks[7], (H,), jnp.float32)),
        "w_fc": jax.random.normal(ks[8], (6, H), jnp.float32) * s,
        "b_fc": jax.random.normal(ks[9], (6,), jnp.float32) * s,
    }

    glove_vec = jax.random.normal(ks[10], (T, B, I), jnp.float32)
    # pack_padded_sequence expects descending lengths.
    sent_lengths = jnp.array([8, 7, 6, 5, 4, 3, 2, 1], dtype=jnp.int32)

    out = lstm_forward(glove_vec, sent_lengths, params)
    out = jax.block_until_ready(out)

    ref = lstm_reference(glove_vec, sent_lengths, params)
    assert out.shape == (B, 6)
    assert jnp.allclose(out, ref, atol=1e-4, rtol=1e-4), "mismatch vs reference"

    print("KERNEL_OK")
</pallas_src>

<mosaic_0001>
module attributes {stable_mosaic.version = 11 : i64} {
  func.func @lstm_kernel(%arg0: memref<64x16xf32, #tpu.memory_space<vmem>>, %arg1: memref<8x1xi32, #tpu.memory_space<vmem>>, %arg2: memref<16x128xf32, #tpu.memory_space<vmem>>, %arg3: memref<32x128xf32, #tpu.memory_space<vmem>>, %arg4: memref<1x128xf32, #tpu.memory_space<vmem>>, %arg5: memref<1x32xf32, #tpu.memory_space<vmem>>, %arg6: memref<1x32xf32, #tpu.memory_space<vmem>>, %arg7: memref<32x128xf32, #tpu.memory_space<vmem>>, %arg8: memref<1x128xf32, #tpu.memory_space<vmem>>, %arg9: memref<8x128xf32, #tpu.memory_space<vmem>>) attributes {dimension_semantics = [], scalar_prefetch = 0 : i64, scratch_operands = 0 : i64, tpu.core_type = #tpu.core_type<tc>} {
    %c0 = arith.constant 0 : index
    %c0_0 = arith.constant 0 : index
    %0 = vector.load %arg0[%c0, %c0_0] : memref<64x16xf32, #tpu.memory_space<vmem>>, vector<64x16xf32>
    %c0_1 = arith.constant 0 : index
    %c0_2 = arith.constant 0 : index
    %1 = vector.load %arg2[%c0_1, %c0_2] : memref<16x128xf32, #tpu.memory_space<vmem>>, vector<16x128xf32>
    %cst = arith.constant dense<0.000000e+00> : vector<64x128xf32>
    %2 = tpu.matmul %0, %1, %cst {dimension_numbers = #tpu.dot_dimension_numbers<[1], [0], [0], [1], [0, 0, 1, 1], [], []>} : vector<64x16xf32>, vector<16x128xf32>, vector<64x128xf32> -> vector<64x128xf32>
    %c0_3 = arith.constant 0 : index
    %c0_4 = arith.constant 0 : index
    %3 = vector.load %arg4[%c0_3, %c0_4] : memref<1x128xf32, #tpu.memory_space<vmem>>, vector<1x128xf32>
    %4 = vector.broadcast %3 : vector<1x128xf32> to vector<64x128xf32>
    %5 = arith.addf %2, %4 : vector<64x128xf32>
    %c0_5 = arith.constant 0 : index
    %c0_6 = arith.constant 0 : index
    %6 = vector.load %arg3[%c0_5, %c0_6] : memref<32x128xf32, #tpu.memory_space<vmem>>, vector<32x128xf32>
    %c0_7 = arith.constant 0 : index
    %c0_8 = arith.constant 0 : index
    %7 = vector.load %arg1[%c0_7, %c0_8] : memref<8x1xi32, #tpu.memory_space<vmem>>, vector<8x1xi32>
    %cst_9 = arith.constant 0.000000e+00 : f32
    %8 = vector.broadcast %cst_9 : f32 to vector<8x32xf32>
    %cst_10 = arith.constant 0.000000e+00 : f32
    %9 = vector.broadcast %cst_10 : f32 to vector<8x32xf32>
    %cst_11 = arith.constant 0.000000e+00 : f32
    %10 = vector.broadcast %cst_11 : f32 to vector<8x32xf32>
    %11 = vector.extract_strided_slice %5 {offsets = [0, 0], sizes = [8, 128], strides = [1, 1]} : vector<64x128xf32> to vector<8x128xf32>
    %cst_12 = arith.constant dense<0.000000e+00> : vector<8x128xf32>
    %12 = tpu.matmul %8, %6, %cst_12 {dimension_numbers = #tpu.dot_dimension_numbers<[1], [0], [0], [1], [0, 0, 1, 1], [], []>} : vector<8x32xf32>, vector<32x128xf32>, vector<8x128xf32> -> vector<8x128xf32>
    %13 = arith.addf %11, %12 : vector<8x128xf32>
    %14 = vector.extract_strided_slice %13 {offsets = [0, 0], sizes = [8, 32], strides = [1, 1]} : vector<8x128xf32> to vector<8x32xf32>
    %15 = arith.negf %14 : vector<8x32xf32>
    %16 = math.exp %15 : vector<8x32xf32>
    %cst_13 = arith.constant 1.000000e+00 : f32
    %17 = vector.broadcast %cst_13 : f32 to vector<8x32xf32>
    %18 = arith.addf %17, %16 : vector<8x32xf32>
    %19 = arith.divf %17, %18 : vector<8x32xf32>
    %20 = vector.extract_strided_slice %13 {offsets = [0, 32], sizes = [8, 32], strides = [1, 1]} : vector<8x128xf32> to vector<8x32xf32>
    %21 = arith.negf %20 : vector<8x32xf32>
    %22 = math.exp %21 : vector<8x32xf32>
    %cst_14 = arith.constant 1.000000e+00 : f32
    %23 = vector.broadcast %cst_14 : f32 to vector<8x32xf32>
    %24 = arith.addf %23, %22 : vector<8x32xf32>
    %25 = arith.divf %23, %24 : vector<8x32xf32>
    %26 = vector.extract_strided_slice %13 {offsets = [0, 64], sizes = [8, 32], strides = [1, 1]} : vector<8x128xf32> to vector<8x32xf32>
    %27 = math.tanh %26 : vector<8x32xf32>
    %28 = vector.extract_strided_slice %13 {offsets = [0, 96], sizes = [8, 32], strides = [1, 1]} : vector<8x128xf32> to vector<8x32xf32>
    %29 = arith.negf %28 : vector<8x32xf32>
    %30 = math.exp %29 : vector<8x32xf32>
    %cst_15 = arith.constant 1.000000e+00 : f32
    %31 = vector.broadcast %cst_15 : f32 to vector<8x32xf32>
    %32 = arith.addf %31, %30 : vector<8x32xf32>
    %33 = arith.divf %31, %32 : vector<8x32xf32>
    %34 = arith.mulf %25, %9 : vector<8x32xf32>
    %35 = arith.mulf %19, %27 : vector<8x32xf32>
    %36 = arith.addf %34, %35 : vector<8x32xf32>
    %37 = math.tanh %36 : vector<8x32xf32>
    %38 = arith.mulf %33, %37 : vector<8x32xf32>
    %c1_i32 = arith.constant 1 : i32
    %39 = vector.broadcast %c1_i32 : i32 to vector<8x1xi32>
    %40 = arith.cmpi eq, %7, %39 : vector<8x1xi32>
    %41 = vector.shape_cast %40 : vector<8x1xi1> to vector<8x1xi1>
    %42 = vector.broadcast %41 : vector<8x1xi1> to vector<8x32xi1>
    %43 = arith.select %42, %38, %10 : vector<8x32xi1>, vector<8x32xf32>
    %44 = vector.extract_strided_slice %5 {offsets = [8, 0], sizes = [8, 128], strides = [1, 1]} : vector<64x128xf32> to vector<8x128xf32>
    %cst_16 = arith.constant dense<0.000000e+00> : vector<8x128xf32>
    %45 = tpu.matmul %38, %6, %cst_16 {dimension_numbers = #tpu.dot_dimension_numbers<[1], [0], [0], [1], [0, 0, 1, 1], [], []>} : vector<8x32xf32>, vector<32x128xf32>, vector<8x128xf32> -> vector<8x128xf32>
    %46 = arith.addf %44, %45 : vector<8x128xf32>
    %47 = vector.extract_strided_slice %46 {offsets = [0, 0], sizes = [8, 32], strides = [1, 1]} : vector<8x128xf32> to vector<8x32xf32>
    %48 = arith.negf %47 : vector<8x32xf32>
    %49 = math.exp %48 : vector<8x32xf32>
    %cst_17 = arith.constant 1.000000e+00 : f32
    %50 = vector.broadcast %cst_17 : f32 to vector<8x32xf32>
    %51 = arith.addf %50, %49 : vector<8x32xf32>
    %52 = arith.divf %50, %51 : vector<8x32xf32>
    %53 = vector.extract_strided_slice %46 {offsets = [0, 32], sizes = [8, 32], strides = [1, 1]} : vector<8x128xf32> to vector<8x32xf32>
    %54 = arith.negf %53 : vector<8x32xf32>
    %55 = math.exp %54 : vector<8x32xf32>
    %cst_18 = arith.constant 1.000000e+00 : f32
    %56 = vector.broadcast %cst_18 : f32 to vector<8x32xf32>
    %57 = arith.addf %56, %55 : vector<8x32xf32>
    %58 = arith.divf %56, %57 : vector<8x32xf32>
    %59 = vector.extract_strided_slice %46 {offsets = [0, 64], sizes = [8, 32], strides = [1, 1]} : vector<8x128xf32> to vector<8x32xf32>
    %60 = math.tanh %59 : vector<8x32xf32>
    %61 = vector.extract_strided_slice %46 {offsets = [0, 96], sizes = [8, 32], strides = [1, 1]} : vector<8x128xf32> to vector<8x32xf32>
    %62 = arith.negf %61 : vector<8x32xf32>
    %63 = math.exp %62 : vector<8x32xf32>
    %cst_19 = arith.constant 1.000000e+00 : f32
    %64 = vector.broadcast %cst_19 : f32 to vector<8x32xf32>
    %65 = arith.addf %64, %63 : vector<8x32xf32>
    %66 = arith.divf %64, %65 : vector<8x32xf32>
    %67 = arith.mulf %58, %36 : vector<8x32xf32>
    %68 = arith.mulf %52, %60 : vector<8x32xf32>
    %69 = arith.addf %67, %68 : vector<8x32xf32>
    %70 = math.tanh %69 : vector<8x32xf32>
    %71 = arith.mulf %66, %70 : vector<8x32xf32>
    %c2_i32 = arith.constant 2 : i32
    %72 = vector.broadcast %c2_i32 : i32 to vector<8x1xi32>
    %73 = arith.cmpi eq, %7, %72 : vector<8x1xi32>
    %74 = vector.shape_cast %73 : vector<8x1xi1> to vector<8x1xi1>
    %75 = vector.broadcast %74 : vector<8x1xi1> to vector<8x32xi1>
    %76 = arith.select %75, %71, %43 : vector<8x32xi1>, vector<8x32xf32>
    %77 = vector.extract_strided_slice %5 {offsets = [16, 0], sizes = [8, 128], strides = [1, 1]} : vector<64x128xf32> to vector<8x128xf32>
    %cst_20 = arith.constant dense<0.000000e+00> : vector<8x128xf32>
    %78 = tpu.matmul %71, %6, %cst_20 {dimension_numbers = #tpu.dot_dimension_numbers<[1], [0], [0], [1], [0, 0, 1, 1], [], []>} : vector<8x32xf32>, vector<32x128xf32>, vector<8x128xf32> -> vector<8x128xf32>
    %79 = arith.addf %77, %78 : vector<8x128xf32>
    %80 = vector.extract_strided_slice %79 {offsets = [0, 0], sizes = [8, 32], strides = [1, 1]} : vector<8x128xf32> to vector<8x32xf32>
    %81 = arith.negf %80 : vector<8x32xf32>
    %82 = math.exp %81 : vector<8x32xf32>
    %cst_21 = arith.constant 1.000000e+00 : f32
    %83 = vector.broadcast %cst_21 : f32 to vector<8x32xf32>
    %84 = arith.addf %83, %82 : vector<8x32xf32>
    %85 = arith.divf %83, %84 : vector<8x32xf32>
    %86 = vector.extract_strided_slice %79 {offsets = [0, 32], sizes = [8, 32], strides = [1, 1]} : vector<8x128xf32> to vector<8x32xf32>
    %87 = arith.negf %86 : vector<8x32xf32>
    %88 = math.exp %87 : vector<8x32xf32>
    %cst_22 = arith.constant 1.000000e+00 : f32
    %89 = vector.broadcast %cst_22 : f32 to vector<8x32xf32>
    %90 = arith.addf %89, %88 : vector<8x32xf32>
    %91 = arith.divf %89, %90 : vector<8x32xf32>
    %92 = vector.extract_strided_slice %79 {offsets = [0, 64], sizes = [8, 32], strides = [1, 1]} : vector<8x128xf32> to vector<8x32xf32>
    %93 = math.tanh %92 : vector<8x32xf32>
    %94 = vector.extract_strided_slice %79 {offsets = [0, 96], sizes = [8, 32], strides = [1, 1]} : vector<8x128xf32> to vector<8x32xf32>
    %95 = arith.negf %94 : vector<8x32xf32>
    %96 = math.exp %95 : vector<8x32xf32>
    %cst_23 = arith.constant 1.000000e+00 : f32
    %97 = vector.broadcast %cst_23 : f32 to vector<8x32xf32>
    %98 = arith.addf %97, %96 : vector<8x32xf32>
    %99 = arith.divf %97, %98 : vector<8x32xf32>
    %100 = arith.mulf %91, %69 : vector<8x32xf32>
    %101 = arith.mulf %85, %93 : vector<8x32xf32>
    %102 = arith.addf %100, %101 : vector<8x32xf32>
    %103 = math.tanh %102 : vector<8x32xf32>
    %104 = arith.mulf %99, %103 : vector<8x32xf32>
    %c3_i32 = arith.constant 3 : i32
    %105 = vector.broadcast %c3_i32 : i32 to vector<8x1xi32>
    %106 = arith.cmpi eq, %7, %105 : vector<8x1xi32>
    %107 = vector.shape_cast %106 : vector<8x1xi1> to vector<8x1xi1>
    %108 = vector.broadcast %107 : vector<8x1xi1> to vector<8x32xi1>
    %109 = arith.select %108, %104, %76 : vector<8x32xi1>, vector<8x32xf32>
    %110 = vector.extract_strided_slice %5 {offsets = [24, 0], sizes = [8, 128], strides = [1, 1]} : vector<64x128xf32> to vector<8x128xf32>
    %cst_24 = arith.constant dense<0.000000e+00> : vector<8x128xf32>
    %111 = tpu.matmul %104, %6, %cst_24 {dimension_numbers = #tpu.dot_dimension_numbers<[1], [0], [0], [1], [0, 0, 1, 1], [], []>} : vector<8x32xf32>, vector<32x128xf32>, vector<8x128xf32> -> vector<8x128xf32>
    %112 = arith.addf %110, %111 : vector<8x128xf32>
    %113 = vector.extract_strided_slice %112 {offsets = [0, 0], sizes = [8, 32], strides = [1, 1]} : vector<8x128xf32> to vector<8x32xf32>
    %114 = arith.negf %113 : vector<8x32xf32>
    %115 = math.exp %114 : vector<8x32xf32>
    %cst_25 = arith.constant 1.000000e+00 : f32
    %116 = vector.broadcast %cst_25 : f32 to vector<8x32xf32>
    %117 = arith.addf %116, %115 : vector<8x32xf32>
    %118 = arith.divf %116, %117 : vector<8x32xf32>
    %119 = vector.extract_strided_slice %112 {offsets = [0, 32], sizes = [8, 32], strides = [1, 1]} : vector<8x128xf32> to vector<8x32xf32>
    %120 = arith.negf %119 : vector<8x32xf32>
    %121 = math.exp %120 : vector<8x32xf32>
    %cst_26 = arith.constant 1.000000e+00 : f32
    %122 = vector.broadcast %cst_26 : f32 to vector<8x32xf32>
    %123 = arith.addf %122, %121 : vector<8x32xf32>
    %124 = arith.divf %122, %123 : vector<8x32xf32>
    %125 = vector.extract_strided_slice %112 {offsets = [0, 64], sizes = [8, 32], strides = [1, 1]} : vector<8x128xf32> to vector<8x32xf32>
    %126 = math.tanh %125 : vector<8x32xf32>
    %127 = vector.extract_strided_slice %112 {offsets = [0, 96], sizes = [8, 32], strides = [1, 1]} : vector<8x128xf32> to vector<8x32xf32>
    %128 = arith.negf %127 : vector<8x32xf32>
    %129 = math.exp %128 : vector<8x32xf32>
    %cst_27 = arith.constant 1.000000e+00 : f32
    %130 = vector.broadcast %cst_27 : f32 to vector<8x32xf32>
    %131 = arith.addf %130, %129 : vector<8x32xf32>
    %132 = arith.divf %130, %131 : vector<8x32xf32>
    %133 = arith.mulf %124, %102 : vector<8x32xf32>
    %134 = arith.mulf %118, %126 : vector<8x32xf32>
    %135 = arith.addf %133, %134 : vector<8x32xf32>
    %136 = math.tanh %135 : vector<8x32xf32>
    %137 = arith.mulf %132, %136 : vector<8x32xf32>
    %c4_i32 = arith.constant 4 : i32
    %138 = vector.broadcast %c4_i32 : i32 to vector<8x1xi32>
    %139 = arith.cmpi eq, %7, %138 : vector<8x1xi32>
    %140 = vector.shape_cast %139 : vector<8x1xi1> to vector<8x1xi1>
    %141 = vector.broadcast %140 : vector<8x1xi1> to vector<8x32xi1>
    %142 = arith.select %141, %137, %109 : vector<8x32xi1>, vector<8x32xf32>
    %143 = vector.extract_strided_slice %5 {offsets = [32, 0], sizes = [8, 128], strides = [1, 1]} : vector<64x128xf32> to vector<8x128xf32>
    %cst_28 = arith.constant dense<0.000000e+00> : vector<8x128xf32>
    %144 = tpu.matmul %137, %6, %cst_28 {dimension_numbers = #tpu.dot_dimension_numbers<[1], [0], [0], [1], [0, 0, 1, 1], [], []>} : vector<8x32xf32>, vector<32x128xf32>, vector<8x128xf32> -> vector<8x128xf32>
    %145 = arith.addf %143, %144 : vector<8x128xf32>
    %146 = vector.extract_strided_slice %145 {offsets = [0, 0], sizes = [8, 32], strides = [1, 1]} : vector<8x128xf32> to vector<8x32xf32>
    %147 = arith.negf %146 : vector<8x32xf32>
    %148 = math.exp %147 : vector<8x32xf32>
    %cst_29 = arith.constant 1.000000e+00 : f32
    %149 = vector.broadcast %cst_29 : f32 to vector<8x32xf32>
    %150 = arith.addf %149, %148 : vector<8x32xf32>
    %151 = arith.divf %149, %150 : vector<8x32xf32>
    %152 = vector.extract_strided_slice %145 {offsets = [0, 32], sizes = [8, 32], strides = [1, 1]} : vector<8x128xf32> to vector<8x32xf32>
    %153 = arith.negf %152 : vector<8x32xf32>
    %154 = math.exp %153 : vector<8x32xf32>
    %cst_30 = arith.constant 1.000000e+00 : f32
    %155 = vector.broadcast %cst_30 : f32 to vector<8x32xf32>
    %156 = arith.addf %155, %154 : vector<8x32xf32>
    %157 = arith.divf %155, %156 : vector<8x32xf32>
    %158 = vector.extract_strided_slice %145 {offsets = [0, 64], sizes = [8, 32], strides = [1, 1]} : vector<8x128xf32> to vector<8x32xf32>
    %159 = math.tanh %158 : vector<8x32xf32>
    %160 = vector.extract_strided_slice %145 {offsets = [0, 96], sizes = [8, 32], strides = [1, 1]} : vector<8x128xf32> to vector<8x32xf32>
    %161 = arith.negf %160 : vector<8x32xf32>
    %162 = math.exp %161 : vector<8x32xf32>
    %cst_31 = arith.constant 1.000000e+00 : f32
    %163 = vector.broadcast %cst_31 : f32 to vector<8x32xf32>
    %164 = arith.addf %163, %162 : vector<8x32xf32>
    %165 = arith.divf %163, %164 : vector<8x32xf32>
    %166 = arith.mulf %157, %135 : vector<8x32xf32>
    %167 = arith.mulf %151, %159 : vector<8x32xf32>
    %168 = arith.addf %166, %167 : vector<8x32xf32>
    %169 = math.tanh %168 : vector<8x32xf32>
    %170 = arith.mulf %165, %169 : vector<8x32xf32>
    %c5_i32 = arith.constant 5 : i32
    %171 = vector.broadcast %c5_i32 : i32 to vector<8x1xi32>
    %172 = arith.cmpi eq, %7, %171 : vector<8x1xi32>
    %173 = vector.shape_cast %172 : vector<8x1xi1> to vector<8x1xi1>
    %174 = vector.broadcast %173 : vector<8x1xi1> to vector<8x32xi1>
    %175 = arith.select %174, %170, %142 : vector<8x32xi1>, vector<8x32xf32>
    %176 = vector.extract_strided_slice %5 {offsets = [40, 0], sizes = [8, 128], strides = [1, 1]} : vector<64x128xf32> to vector<8x128xf32>
    %cst_32 = arith.constant dense<0.000000e+00> : vector<8x128xf32>
    %177 = tpu.matmul %170, %6, %cst_32 {dimension_numbers = #tpu.dot_dimension_numbers<[1], [0], [0], [1], [0, 0, 1, 1], [], []>} : vector<8x32xf32>, vector<32x128xf32>, vector<8x128xf32> -> vector<8x128xf32>
    %178 = arith.addf %176, %177 : vector<8x128xf32>
    %179 = vector.extract_strided_slice %178 {offsets = [0, 0], sizes = [8, 32], strides = [1, 1]} : vector<8x128xf32> to vector<8x32xf32>
    %180 = arith.negf %179 : vector<8x32xf32>
    %181 = math.exp %180 : vector<8x32xf32>
    %cst_33 = arith.constant 1.000000e+00 : f32
    %182 = vector.broadcast %cst_33 : f32 to vector<8x32xf32>
    %183 = arith.addf %182, %181 : vector<8x32xf32>
    %184 = arith.divf %182, %183 : vector<8x32xf32>
    %185 = vector.extract_strided_slice %178 {offsets = [0, 32], sizes = [8, 32], strides = [1, 1]} : vector<8x128xf32> to vector<8x32xf32>
    %186 = arith.negf %185 : vector<8x32xf32>
    %187 = math.exp %186 : vector<8x32xf32>
    %cst_34 = arith.constant 1.000000e+00 : f32
    %188 = vector.broadcast %cst_34 : f32 to vector<8x32xf32>
    %189 = arith.addf %188, %187 : vector<8x32xf32>
    %190 = arith.divf %188, %189 : vector<8x32xf32>
    %191 = vector.extract_strided_slice %178 {offsets = [0, 64], sizes = [8, 32], strides = [1, 1]} : vector<8x128xf32> to vector<8x32xf32>
    %192 = math.tanh %191 : vector<8x32xf32>
    %193 = vector.extract_strided_slice %178 {offsets = [0, 96], sizes = [8, 32], strides = [1, 1]} : vector<8x128xf32> to vector<8x32xf32>
    %194 = arith.negf %193 : vector<8x32xf32>
    %195 = math.exp %194 : vector<8x32xf32>
    %cst_35 = arith.constant 1.000000e+00 : f32
    %196 = vector.broadcast %cst_35 : f32 to vector<8x32xf32>
    %197 = arith.addf %196, %195 : vector<8x32xf32>
    %198 = arith.divf %196, %197 : vector<8x32xf32>
    %199 = arith.mulf %190, %168 : vector<8x32xf32>
    %200 = arith.mulf %184, %192 : vector<8x32xf32>
    %201 = arith.addf %199, %200 : vector<8x32xf32>
    %202 = math.tanh %201 : vector<8x32xf32>
    %203 = arith.mulf %198, %202 : vector<8x32xf32>
    %c6_i32 = arith.constant 6 : i32
    %204 = vector.broadcast %c6_i32 : i32 to vector<8x1xi32>
    %205 = arith.cmpi eq, %7, %204 : vector<8x1xi32>
    %206 = vector.shape_cast %205 : vector<8x1xi1> to vector<8x1xi1>
    %207 = vector.broadcast %206 : vector<8x1xi1> to vector<8x32xi1>
    %208 = arith.select %207, %203, %175 : vector<8x32xi1>, vector<8x32xf32>
    %209 = vector.extract_strided_slice %5 {offsets = [48, 0], sizes = [8, 128], strides = [1, 1]} : vector<64x128xf32> to vector<8x128xf32>
    %cst_36 = arith.constant dense<0.000000e+00> : vector<8x128xf32>
    %210 = tpu.matmul %203, %6, %cst_36 {dimension_numbers = #tpu.dot_dimension_numbers<[1], [0], [0], [1], [0, 0, 1, 1], [], []>} : vector<8x32xf32>, vector<32x128xf32>, vector<8x128xf32> -> vector<8x128xf32>
    %211 = arith.addf %209, %210 : vector<8x128xf32>
    %212 = vector.extract_strided_slice %211 {offsets = [0, 0], sizes = [8, 32], strides = [1, 1]} : vector<8x128xf32> to vector<8x32xf32>
    %213 = arith.negf %212 : vector<8x32xf32>
    %214 = math.exp %213 : vector<8x32xf32>
    %cst_37 = arith.constant 1.000000e+00 : f32
    %215 = vector.broadcast %cst_37 : f32 to vector<8x32xf32>
    %216 = arith.addf %215, %214 : vector<8x32xf32>
    %217 = arith.divf %215, %216 : vector<8x32xf32>
    %218 = vector.extract_strided_slice %211 {offsets = [0, 32], sizes = [8, 32], strides = [1, 1]} : vector<8x128xf32> to vector<8x32xf32>
    %219 = arith.negf %218 : vector<8x32xf32>
    %220 = math.exp %219 : vector<8x32xf32>
    %cst_38 = arith.constant 1.000000e+00 : f32
    %221 = vector.broadcast %cst_38 : f32 to vector<8x32xf32>
    %222 = arith.addf %221, %220 : vector<8x32xf32>
    %223 = arith.divf %221, %222 : vector<8x32xf32>
    %224 = vector.extract_strided_slice %211 {offsets = [0, 64], sizes = [8, 32], strides = [1, 1]} : vector<8x128xf32> to vector<8x32xf32>
    %225 = math.tanh %224 : vector<8x32xf32>
    %226 = vector.extract_strided_slice %211 {offsets = [0, 96], sizes = [8, 32], strides = [1, 1]} : vector<8x128xf32> to vector<8x32xf32>
    %227 = arith.negf %226 : vector<8x32xf32>
    %228 = math.exp %227 : vector<8x32xf32>
    %cst_39 = arith.constant 1.000000e+00 : f32
    %229 = vector.broadcast %cst_39 : f32 to vector<8x32xf32>
    %230 = arith.addf %229, %228 : vector<8x32xf32>
    %231 = arith.divf %229, %230 : vector<8x32xf32>
    %232 = arith.mulf %223, %201 : vector<8x32xf32>
    %233 = arith.mulf %217, %225 : vector<8x32xf32>
    %234 = arith.addf %232, %233 : vector<8x32xf32>
    %235 = math.tanh %234 : vector<8x32xf32>
    %236 = arith.mulf %231, %235 : vector<8x32xf32>
    %c7_i32 = arith.constant 7 : i32
    %237 = vector.broadcast %c7_i32 : i32 to vector<8x1xi32>
    %238 = arith.cmpi eq, %7, %237 : vector<8x1xi32>
    %239 = vector.shape_cast %238 : vector<8x1xi1> to vector<8x1xi1>
    %240 = vector.broadcast %239 : vector<8x1xi1> to vector<8x32xi1>
    %241 = arith.select %240, %236, %208 : vector<8x32xi1>, vector<8x32xf32>
    %242 = vector.extract_strided_slice %5 {offsets = [56, 0], sizes = [8, 128], strides = [1, 1]} : vector<64x128xf32> to vector<8x128xf32>
    %cst_40 = arith.constant dense<0.000000e+00> : vector<8x128xf32>
    %243 = tpu.matmul %236, %6, %cst_40 {dimension_numbers = #tpu.dot_dimension_numbers<[1], [0], [0], [1], [0, 0, 1, 1], [], []>} : vector<8x32xf32>, vector<32x128xf32>, vector<8x128xf32> -> vector<8x128xf32>
    %244 = arith.addf %242, %243 : vector<8x128xf32>
    %245 = vector.extract_strided_slice %244 {offsets = [0, 0], sizes = [8, 32], strides = [1, 1]} : vector<8x128xf32> to vector<8x32xf32>
    %246 = arith.negf %245 : vector<8x32xf32>
    %247 = math.exp %246 : vector<8x32xf32>
    %cst_41 = arith.constant 1.000000e+00 : f32
    %248 = vector.broadcast %cst_41 : f32 to vector<8x32xf32>
    %249 = arith.addf %248, %247 : vector<8x32xf32>
    %250 = arith.divf %248, %249 : vector<8x32xf32>
    %251 = vector.extract_strided_slice %244 {offsets = [0, 32], sizes = [8, 32], strides = [1, 1]} : vector<8x128xf32> to vector<8x32xf32>
    %252 = arith.negf %251 : vector<8x32xf32>
    %253 = math.exp %252 : vector<8x32xf32>
    %cst_42 = arith.constant 1.000000e+00 : f32
    %254 = vector.broadcast %cst_42 : f32 to vector<8x32xf32>
    %255 = arith.addf %254, %253 : vector<8x32xf32>
    %256 = arith.divf %254, %255 : vector<8x32xf32>
    %257 = vector.extract_strided_slice %244 {offsets = [0, 64], sizes = [8, 32], strides = [1, 1]} : vector<8x128xf32> to vector<8x32xf32>
    %258 = math.tanh %257 : vector<8x32xf32>
    %259 = vector.extract_strided_slice %244 {offsets = [0, 96], sizes = [8, 32], strides = [1, 1]} : vector<8x128xf32> to vector<8x32xf32>
    %260 = arith.negf %259 : vector<8x32xf32>
    %261 = math.exp %260 : vector<8x32xf32>
    %cst_43 = arith.constant 1.000000e+00 : f32
    %262 = vector.broadcast %cst_43 : f32 to vector<8x32xf32>
    %263 = arith.addf %262, %261 : vector<8x32xf32>
    %264 = arith.divf %262, %263 : vector<8x32xf32>
    %265 = arith.mulf %256, %234 : vector<8x32xf32>
    %266 = arith.mulf %250, %258 : vector<8x32xf32>
    %267 = arith.addf %265, %266 : vector<8x32xf32>
    %268 = math.tanh %267 : vector<8x32xf32>
    %269 = arith.mulf %264, %268 : vector<8x32xf32>
    %c8_i32 = arith.constant 8 : i32
    %270 = vector.broadcast %c8_i32 : i32 to vector<8x1xi32>
    %271 = arith.cmpi eq, %7, %270 : vector<8x1xi32>
    %272 = vector.shape_cast %271 : vector<8x1xi1> to vector<8x1xi1>
    %273 = vector.broadcast %272 : vector<8x1xi1> to vector<8x32xi1>
    %274 = arith.select %273, %269, %241 : vector<8x32xi1>, vector<8x32xf32>
    %c0_44 = arith.constant 0 : index
    %c0_45 = arith.constant 0 : index
    %275 = vector.load %arg5[%c0_44, %c0_45] : memref<1x32xf32, #tpu.memory_space<vmem>>, vector<1x32xf32>
    %276 = vector.broadcast %275 : vector<1x32xf32> to vector<8x32xf32>
    %277 = arith.mulf %274, %276 : vector<8x32xf32>
    %c0_46 = arith.constant 0 : index
    %c0_47 = arith.constant 0 : index
    %278 = vector.load %arg6[%c0_46, %c0_47] : memref<1x32xf32, #tpu.memory_space<vmem>>, vector<1x32xf32>
    %279 = vector.broadcast %278 : vector<1x32xf32> to vector<8x32xf32>
    %280 = arith.addf %277, %279 : vector<8x32xf32>
    %c0_48 = arith.constant 0 : index
    %c0_49 = arith.constant 0 : index
    %281 = vector.load %arg7[%c0_48, %c0_49] : memref<32x128xf32, #tpu.memory_space<vmem>>, vector<32x128xf32>
    %cst_50 = arith.constant dense<0.000000e+00> : vector<8x128xf32>
    %282 = tpu.matmul %280, %281, %cst_50 {dimension_numbers = #tpu.dot_dimension_numbers<[1], [0], [0], [1], [0, 0, 1, 1], [], []>} : vector<8x32xf32>, vector<32x128xf32>, vector<8x128xf32> -> vector<8x128xf32>
    %c0_51 = arith.constant 0 : index
    %c0_52 = arith.constant 0 : index
    %283 = vector.load %arg8[%c0_51, %c0_52] : memref<1x128xf32, #tpu.memory_space<vmem>>, vector<1x128xf32>
    %284 = vector.broadcast %283 : vector<1x128xf32> to vector<8x128xf32>
    %285 = arith.addf %282, %284 : vector<8x128xf32>
    %c0_53 = arith.constant 0 : index
    %c0_54 = arith.constant 0 : index
    %286 = vector.load %arg9[%c0_53, %c0_54] : memref<8x128xf32, #tpu.memory_space<vmem>>, vector<8x128xf32>
    tpu.vector_store %arg9[%c0_53, %c0_54], %285 {strides = array<i32>} : memref<8x128xf32, #tpu.memory_space<vmem>>, vector<8x128xf32>,
    return
  }
}

</mosaic_0001>

<llo_original>
// kernel: tpu_custom_call.1
$region0: #{tpu_custom_call.1}
  #allocation0 [shape = 'u32[]', space=smem, size = 0x4, offset = 0x4, fixed_abs, tag = 'smem constant byte address 0x4 - core index']
  #allocation1 [shape = 'u32[72,128]{1,0:T(1,128)}', space=vmem, size = 0x9000, scoped, tag = 'internal scratch']
  %s0 = inlined_call_operand.vmem [shape: f32[64,16], index: 0, kind: input, shape index: {}]
  %s1 = inlined_call_operand.vmem [shape: s32[8,1], index: 1, kind: input, shape index: {}]
  %s2 = inlined_call_operand.vmem [shape: f32[16,128], index: 2, kind: input, shape index: {}]
  %s3 = inlined_call_operand.vmem [shape: f32[32,128], index: 3, kind: input, shape index: {}]
  %s4 = inlined_call_operand.vmem [shape: f32[1,128], index: 4, kind: input, shape index: {}]
  %s5 = inlined_call_operand.vmem [shape: f32[1,32], index: 5, kind: input, shape index: {}]
  %s6 = inlined_call_operand.vmem [shape: f32[1,32], index: 6, kind: input, shape index: {}]
  %s7 = inlined_call_operand.vmem [shape: f32[32,128], index: 7, kind: input, shape index: {}]
  %s8 = inlined_call_operand.vmem [shape: f32[1,128], index: 8, kind: input, shape index: {}]
  %s9 = inlined_call_operand.hbm [shape: f32[8,128], index: 9, kind: output, shape index: {}]
  %s10 = sld [smem:[#allocation0]]
  $region46: #{tpu_custom_call.1} parent=0
    _
  %s12 = ssub.s32 1, %s10
  %s13 = scalar_select 0, %s12, %s10
  $region1: #{tpu_custom_call.1} parent=0
    #allocation2 [shape = 'u8[4096]{0}', space=vmem, size = 0x1000, scoped, tag = 'output window, operand 0, single buffered']
    #allocation3 [shape = 's32[1]{0}', space=sflag, size = 0x4, scoped, tag = 'scoped memory for tpu_custom_call.1']
    %14 = vsyncpa [#allocation3], 0
    // Predicated region
    $region2: #{tpu_custom_call.1} parent=1 // pred_check
      _
    $region3: #{tpu_custom_call.1} parent=1 // pred_check_branch
      %16 = sbr.rel (0) target = $region5
    $region4: #{tpu_custom_call.1} parent=1 // pred_region
      _
    $region5: #{tpu_custom_call.1} parent=1 // pred_fallthru
      _
    // Predicated region
    $region6: #{tpu_custom_call.1} parent=1 // pred_check
      _
    $region7: #{tpu_custom_call.1} parent=1 // pred_check_branch
      %18 = sbr.rel (0) target = $region9
    $region8: #{tpu_custom_call.1} parent=1 // pred_region
      _
    $region9: #{tpu_custom_call.1} parent=1 // pred_fallthru
      _
    // Predicated region
    $region10: #{tpu_custom_call.1} parent=1 // pred_check
      _
    $region11: #{tpu_custom_call.1} parent=1 // pred_check_branch
      %20 = sbr.rel (0) target = $region13
    $region12: #{tpu_custom_call.1} parent=1 // pred_region
      _
    $region13: #{tpu_custom_call.1} parent=1 // pred_fallthru
      _
    // Predicated region
    $region14: #{tpu_custom_call.1} parent=1 // pred_check
      _
    $region15: #{tpu_custom_call.1} parent=1 // pred_check_branch
      %22 = sbr.rel (0) target = $region17
    $region16: #{tpu_custom_call.1} parent=1 // pred_region
      _
    $region17: #{tpu_custom_call.1} parent=1 // pred_fallthru
      _
    // Predicated region
    $region18: #{tpu_custom_call.1} parent=1 // pred_check
      _
    $region19: #{tpu_custom_call.1} parent=1 // pred_check_branch
      %24 = sbr.rel (0) target = $region21
    $region20: #{tpu_custom_call.1} parent=1 // pred_region
      _
    $region21: #{tpu_custom_call.1} parent=1 // pred_fallthru
      _
    // Predicated region
    $region22: #{tpu_custom_call.1} parent=1 // pred_check
      _
    $region23: #{tpu_custom_call.1} parent=1 // pred_check_branch
      %26 = sbr.rel (0) target = $region25
    $region24: #{tpu_custom_call.1} parent=1 // pred_region
      _
    $region25: #{tpu_custom_call.1} parent=1 // pred_fallthru
      _
    // Predicated region
    $region26: #{tpu_custom_call.1} parent=1 // pred_check
      _
    $region27: #{tpu_custom_call.1} parent=1 // pred_check_branch
      %28 = sbr.rel (0) target = $region29
    $region28: #{tpu_custom_call.1} parent=1 // pred_region
      _
    $region29: #{tpu_custom_call.1} parent=1 // pred_fallthru
      _
    // Predicated region
    $region30: #{tpu_custom_call.1} parent=1 // pred_check
      _
    $region31: #{tpu_custom_call.1} parent=1 // pred_check_branch
      %30 = sbr.rel (0) target = $region33
    $region32: #{tpu_custom_call.1} parent=1 // pred_region
      _
    $region33: #{tpu_custom_call.1} parent=1 // pred_fallthru
      _
    // Predicated region
    $region34: #{tpu_custom_call.1} parent=1 // pred_check
      _
    $region35: #{tpu_custom_call.1} parent=1 // pred_check_branch
      %32 = sbr.rel (0) target = $region37
    $region36: #{tpu_custom_call.1} parent=1 // pred_region
      _
    $region37: #{tpu_custom_call.1} parent=1 // pred_fallthru
      _
    %v33 = vld [vmem:[%s0] sm:$0xff]
    %v34 = vld [vmem:[%s0 + $0x8] sm:$0xff]
    %v35 = vld [vmem:[%s0 + $0x10] sm:$0xff]
    %v36 = vld [vmem:[%s0 + $0x18] sm:$0xff]
    %v37 = vld [vmem:[%s0 + $0x20] sm:$0xff]
    %v38 = vld [vmem:[%s0 + $0x28] sm:$0xff]
    %v39 = vld [vmem:[%s0 + $0x30] sm:$0xff]
    %v40 = vld [vmem:[%s0 + $0x38] sm:$0xff]
    %v41 = vld [vmem:[%s2] sm:$0xff]
    %v42 = vld [vmem:[%s2 + $0x8] sm:$0xff]
    %v43 = vld [vmem:[%s4] sm:$0x1]
    %v45 = vperm.slane %v43, 0
    %vm47 = vcmask 130048
    %v49 = vsel %vm47, %v33, 0
    %v52 = vsel %vm47, %v34, 0
    %v55 = vsel %vm47, %v35, 0
    %v58 = vsel %vm47, %v36, 0
    %v61 = vsel %vm47, %v37, 0
    %v64 = vsel %vm47, %v38, 0
    %v67 = vsel %vm47, %v39, 0
    %v70 = vsel %vm47, %v40, 0
    %72 = vmatpush.msra.mxu0 0.0
    %73 = vmatpush.msra.mxu0 0.0
    %74 = vmatpush.msra.mxu0 0.0
    %75 = vmatpush.msra.mxu0 0.0
    %76 = vmatpush.msra.mxu0 0.0
    %77 = vmatpush.msra.mxu0 0.0
    %78 = vmatpush.msra.mxu0 0.0
    %79 = vmatpush.msra.mxu0 0.0
    %80 = vmatpush.msra.mxu0 0.0
    %81 = vmatpush.msra.mxu0 0.0
    %82 = vmatpush.msra.mxu0 0.0
    %83 = vmatpush.msra.mxu0 0.0
    %84 = vmatpush.msra.mxu0 0.0
    %85 = vmatpush.msra.mxu0 0.0
    %86 = vmatpush.msra.mxu0 %v42
    %87 = vmatpush.msra.mxu0 %v41
    %88 = vmatmul.f32.gmra.mxu0 %v49
    %v89 = vpop.f32.mrf.mxu0
    %v90 = vadd.f32 %v45, %v89
    %91 = vmatmul.f32.gmra.mxu0 %v52
    %v92 = vpop.f32.mrf.mxu0
    %v93 = vadd.f32 %v45, %v92
    %94 = vmatmul.f32.gmra.mxu0 %v55
    %v95 = vpop.f32.mrf.mxu0
    %v96 = vadd.f32 %v45, %v95
    %97 = vmatmul.f32.gmra.mxu0 %v58
    %v98 = vpop.f32.mrf.mxu0
    %v99 = vadd.f32 %v45, %v98
    %100 = vmatmul.f32.gmra.mxu0 %v61
    %v101 = vpop.f32.mrf.mxu0
    %v102 = vadd.f32 %v45, %v101
    %103 = vmatmul.f32.gmra.mxu0 %v64
    %v104 = vpop.f32.mrf.mxu0
    %v105 = vadd.f32 %v45, %v104
    %106 = vmatmul.f32.gmra.mxu0 %v67
    %v107 = vpop.f32.mrf.mxu0
    %v108 = vadd.f32 %v45, %v107
    %109 = vmatmul.f32.gmra.mxu0 %v70
    %v110 = vpop.f32.mrf.mxu0
    %v111 = vadd.f32 %v45, %v110
    %112 = vdwg.mxu0
    %v113 = vld [vmem:[%s3] sm:$0xff]
    %v114 = vld [vmem:[%s3 + $0x8] sm:$0xff]
    %v115 = vld [vmem:[%s3 + $0x10] sm:$0xff]
    %v116 = vld [vmem:[%s3 + $0x18] sm:$0xff]
    %v117 = vld [vmem:[%s1] sm:$0xff]
    %vm118 = vcmask 261120
    %v120 = vsel %vm118, 0.0, 0
    %122 = vmatpush.msra.mxu0 0.0
    %123 = vmatpush.msra.mxu0 0.0
    %124 = vmatpush.msra.mxu0 0.0
    %125 = vmatpush.msra.mxu0 0.0
    %126 = vmatpush.msra.mxu0 0.0
    %127 = vmatpush.msra.mxu0 0.0
    %128 = vmatpush.msra.mxu0 0.0
    %129 = vmatpush.msra.mxu0 0.0
    %130 = vmatpush.msra.mxu0 0.0
    %131 = vmatpush.msra.mxu0 0.0
    %132 = vmatpush.msra.mxu0 0.0
    %133 = vmatpush.msra.mxu0 0.0
    %134 = vmatpush.msra.mxu0 %v116
    %135 = vmatpush.msra.mxu0 %v115
    %136 = vmatpush.msra.mxu0 %v114
    %137 = vmatpush.msra.mxu0 %v113
    %138 = vmatmul.f32.gmra.mxu0 %v120
    %v139 = vpop.f32.mrf.mxu0
    %v140 = vadd.f32 0.0, %v139
    %141 = vdwg.mxu0
    %v142 = vadd.f32 %v90, %v140
    %v143 = vxor.u32 %v142, 2147483648
    %v144 = vmul.f32 %v143, 1.442695
    %v145 = vpow.pop %v144
    %v146 = vadd.f32 %v145, 1.0
    %v147 = vrcp.pop %v146
    %v148 = vmul.f32 %v146, %v147
    %v149 = vsub.f32 1.0, %v148
    %v150 = vmul.f32 %v147, %v149
    %v151 = vadd.f32 %v147, %v150
    %vm152 = vweird.f32 %v146
    %vm153 = vweird.f32 %v147
    %vm154 = vmor %vm152, %vm153
    %v155 = vsel %vm154, %v147, %v151
    %v156 = vand.u32 2147483647, %v146
    %vm157 = vcmp.eq.f32.partialorder %v156, 8.507059e+37
    %v158 = vand.u32 %v146, 2147483648
    %v159 = vor.u32 1.1754944e-38, %v158
    %v160 = vsel %vm157, %v159, %v155
    %v161 = vmul.f32 1.0, %v160
    %v162 = vtanh.pop %v142
    %v163 = vmul.f32 %v161, 0.0
    %165 = vrot.lane.b32.xlu0 %v162, 64
    %v166 = vpop.permute.xlu0 %165
    %v168 = vmul.f32 %v161, %v166
    %170 = vrot.lane.b32.xlu0 %v168, 32
    %v171 = vpop.permute.xlu0 %170
    %v173 = vadd.f32 %v163, %v171
    %v174 = vtanh.pop %v173
    %176 = vrot.lane.b32.xlu0 %v174, 64
    %v177 = vpop.permute.xlu0 %176
    %v179 = vmul.f32 %v161, %v177
    %vm180 = vcmp.eq.s32.totalorder %v117, 1
    %v181 = vsel %vm180, 1, 0
    %182 = vset.pattern.permute.xlu0 0
    %183 = vperm.xlu0 %182, %v181
    %v184 = vpop.permute.xlu0 %183
    %vm185 = vcmp.eq.s32.totalorder %v184, 1
    %v186 = vsel %vm185, %v179, 0.0
    %188 = vrot.lane.b32.xlu0 %v179, 32
    %v189 = vpop.permute.xlu0 %188
    %v190 = vsel %vm118, %v189, 0
    %192 = vmatpush.msra.mxu0 0.0
    %193 = vmatpush.msra.mxu0 0.0
    %194 = vmatpush.msra.mxu0 0.0
    %195 = vmatpush.msra.mxu0 0.0
    %196 = vmatpush.msra.mxu0 0.0
    %197 = vmatpush.msra.mxu0 0.0
    %198 = vmatpush.msra.mxu0 0.0
    %199 = vmatpush.msra.mxu0 0.0
    %200 = vmatpush.msra.mxu0 0.0
    %201 = vmatpush.msra.mxu0 0.0
    %202 = vmatpush.msra.mxu0 0.0
    %203 = vmatpush.msra.mxu0 0.0
    %204 = vmatpush.msra.mxu0 %v116
    %205 = vmatpush.msra.mxu0 %v115
    %206 = vmatpush.msra.mxu0 %v114
    %207 = vmatpush.msra.mxu0 %v113
    %208 = vmatmul.f32.gmra.mxu0 %v190
    %v209 = vpop.f32.mrf.mxu0
    %v210 = vadd.f32 0.0, %v209
    %211 = vdwg.mxu0
    %v212 = vadd.f32 %v93, %v210
    %v213 = vxor.u32 %v212, 2147483648
    %v214 = vmul.f32 %v213, 1.442695
    %v215 = vpow.pop %v214
    %v216 = vadd.f32 %v215, 1.0
    %v217 = vrcp.pop %v216
    %v218 = vmul.f32 %v216, %v217
    %v219 = vsub.f32 1.0, %v218
    %v220 = vmul.f32 %v217, %v219
    %v221 = vadd.f32 %v217, %v220
    %vm222 = vweird.f32 %v216
    %vm223 = vweird.f32 %v217
    %vm224 = vmor %vm222, %vm223
    %v225 = vsel %vm224, %v217, %v221
    %v226 = vand.u32 2147483647, %v216
    %vm227 = vcmp.eq.f32.partialorder %v226, 8.507059e+37
    %v228 = vand.u32 %v216, 2147483648
    %v229 = vor.u32 1.1754944e-38, %v228
    %v230 = vsel %vm227, %v229, %v225
    %v231 = vmul.f32 1.0, %v230
    %v232 = vtanh.pop %v212
    %v233 = vmul.f32 %v231, %v173
    %235 = vrot.lane.b32.xlu0 %v232, 64
    %v236 = vpop.permute.xlu0 %235
    %v238 = vmul.f32 %v231, %v236
    %240 = vrot.lane.b32.xlu0 %v238, 32
    %v241 = vpop.permute.xlu0 %240
    %v243 = vadd.f32 %v233, %v241
    %v244 = vtanh.pop %v243
    %246 = vrot.lane.b32.xlu0 %v244, 64
    %v247 = vpop.permute.xlu0 %246
    %v249 = vmul.f32 %v231, %v247
    %vm250 = vcmp.eq.s32.totalorder %v117, 2
    %v251 = vsel %vm250, 1, 0
    %252 = vset.pattern.permute.xlu0 0
    %253 = vperm.xlu0 %252, %v251
    %v254 = vpop.permute.xlu0 %253
    %vm255 = vcmp.eq.s32.totalorder %v254, 1
    %v256 = vsel %vm255, %v249, %v186
    %258 = vrot.lane.b32.xlu0 %v249, 32
    %v259 = vpop.permute.xlu0 %258
    %v260 = vsel %vm118, %v259, 0
    %262 = vmatpush.msra.mxu0 0.0
    %263 = vmatpush.msra.mxu0 0.0
    %264 = vmatpush.msra.mxu0 0.0
    %265 = vmatpush.msra.mxu0 0.0
    %266 = vmatpush.msra.mxu0 0.0
    %267 = vmatpush.msra.mxu0 0.0
    %268 = vmatpush.msra.mxu0 0.0
    %269 = vmatpush.msra.mxu0 0.0
    %270 = vmatpush.msra.mxu0 0.0
    %271 = vmatpush.msra.mxu0 0.0
    %272 = vmatpush.msra.mxu0 0.0
    %273 = vmatpush.msra.mxu0 0.0
    %274 = vmatpush.msra.mxu0 %v116
    %275 = vmatpush.msra.mxu0 %v115
    %276 = vmatpush.msra.mxu0 %v114
    %277 = vmatpush.msra.mxu0 %v113
    %278 = vmatmul.f32.gmra.mxu0 %v260
    %v279 = vpop.f32.mrf.mxu0
    %v280 = vadd.f32 0.0, %v279
    %281 = vdwg.mxu0
    %v282 = vadd.f32 %v96, %v280
    %v283 = vxor.u32 %v282, 2147483648
    %v284 = vmul.f32 %v283, 1.442695
    %v285 = vpow.pop %v284
    %v286 = vadd.f32 %v285, 1.0
    %v287 = vrcp.pop %v286
    %v288 = vmul.f32 %v286, %v287
    %v289 = vsub.f32 1.0, %v288
    %v290 = vmul.f32 %v287, %v289
    %v291 = vadd.f32 %v287, %v290
    %vm292 = vweird.f32 %v286
    %vm293 = vweird.f32 %v287
    %vm294 = vmor %vm292, %vm293
    %v295 = vsel %vm294, %v287, %v291
    %v296 = vand.u32 2147483647, %v286
    %vm297 = vcmp.eq.f32.partialorder %v296, 8.507059e+37
    %v298 = vand.u32 %v286, 2147483648
    %v299 = vor.u32 1.1754944e-38, %v298
    %v300 = vsel %vm297, %v299, %v295
    %v301 = vmul.f32 1.0, %v300
    %v302 = vtanh.pop %v282
    %v303 = vmul.f32 %v301, %v243
    %305 = vrot.lane.b32.xlu0 %v302, 64
    %v306 = vpop.permute.xlu0 %305
    %v308 = vmul.f32 %v301, %v306
    %310 = vrot.lane.b32.xlu0 %v308, 32
    %v311 = vpop.permute.xlu0 %310
    %v313 = vadd.f32 %v303, %v311
    %v314 = vtanh.pop %v313
    %316 = vrot.lane.b32.xlu0 %v314, 64
    %v317 = vpop.permute.xlu0 %316
    %v319 = vmul.f32 %v301, %v317
    %vm320 = vcmp.eq.s32.totalorder %v117, 3
    %v321 = vsel %vm320, 1, 0
    %322 = vset.pattern.permute.xlu0 0
    %323 = vperm.xlu0 %322, %v321
    %v324 = vpop.permute.xlu0 %323
    %vm325 = vcmp.eq.s32.totalorder %v324, 1
    %v326 = vsel %vm325, %v319, %v256
    %328 = vrot.lane.b32.xlu0 %v319, 32
    %v329 = vpop.permute.xlu0 %328
    %v330 = vsel %vm118, %v329, 0
    %332 = vmatpush.msra.mxu0 0.0
    %333 = vmatpush.msra.mxu0 0.0
    %334 = vmatpush.msra.mxu0 0.0
    %335 = vmatpush.msra.mxu0 0.0
    %336 = vmatpush.msra.mxu0 0.0
    %337 = vmatpush.msra.mxu0 0.0
    %338 = vmatpush.msra.mxu0 0.0
    %339 = vmatpush.msra.mxu0 0.0
    %340 = vmatpush.msra.mxu0 0.0
    %341 = vmatpush.msra.mxu0 0.0
    %342 = vmatpush.msra.mxu0 0.0
    %343 = vmatpush.msra.mxu0 0.0
    %344 = vmatpush.msra.mxu0 %v116
    %345 = vmatpush.msra.mxu0 %v115
    %346 = vmatpush.msra.mxu0 %v114
    %347 = vmatpush.msra.mxu0 %v113
    %348 = vmatmul.f32.gmra.mxu0 %v330
    %v349 = vpop.f32.mrf.mxu0
    %v350 = vadd.f32 0.0, %v349
    %351 = vdwg.mxu0
    %v352 = vadd.f32 %v99, %v350
    %v353 = vxor.u32 %v352, 2147483648
    %v354 = vmul.f32 %v353, 1.442695
    %v355 = vpow.pop %v354
    %v356 = vadd.f32 %v355, 1.0
    %v357 = vrcp.pop %v356
    %v358 = vmul.f32 %v356, %v357
    %v359 = vsub.f32 1.0, %v358
    %v360 = vmul.f32 %v357, %v359
    %v361 = vadd.f32 %v357, %v360
    %vm362 = vweird.f32 %v356
    %vm363 = vweird.f32 %v357
    %vm364 = vmor %vm362, %vm363
    %v365 = vsel %vm364, %v357, %v361
    %v366 = vand.u32 2147483647, %v356
    %vm367 = vcmp.eq.f32.partialorder %v366, 8.507059e+37
    %v368 = vand.u32 %v356, 2147483648
    %v369 = vor.u32 1.1754944e-38, %v368
    %v370 = vsel %vm367, %v369, %v365
    %v371 = vmul.f32 1.0, %v370
    %v372 = vtanh.pop %v352
    %v373 = vmul.f32 %v371, %v313
    %375 = vrot.lane.b32.xlu0 %v372, 64
    %v376 = vpop.permute.xlu0 %375
    %v378 = vmul.f32 %v371, %v376
    %380 = vrot.lane.b32.xlu0 %v378, 32
    %v381 = vpop.permute.xlu0 %380
    %v383 = vadd.f32 %v373, %v381
    %v384 = vtanh.pop %v383
    %386 = vrot.lane.b32.xlu0 %v384, 64
    %v387 = vpop.permute.xlu0 %386
    %v389 = vmul.f32 %v371, %v387
    %vm390 = vcmp.eq.s32.totalorder %v117, 4
    %v391 = vsel %vm390, 1, 0
    %392 = vset.pattern.permute.xlu0 0
    %393 = vperm.xlu0 %392, %v391
    %v394 = vpop.permute.xlu0 %393
    %vm395 = vcmp.eq.s32.totalorder %v394, 1
    %v396 = vsel %vm395, %v389, %v326
    %398 = vrot.lane.b32.xlu0 %v389, 32
    %v399 = vpop.permute.xlu0 %398
    %v400 = vsel %vm118, %v399, 0
    %402 = vmatpush.msra.mxu0 0.0
    %403 = vmatpush.msra.mxu0 0.0
    %404 = vmatpush.msra.mxu0 0.0
    %405 = vmatpush.msra.mxu0 0.0
    %406 = vmatpush.msra.mxu0 0.0
    %407 = vmatpush.msra.mxu0 0.0
    %408 = vmatpush.msra.mxu0 0.0
    %409 = vmatpush.msra.mxu0 0.0
    %410 = vmatpush.msra.mxu0 0.0
    %411 = vmatpush.msra.mxu0 0.0
    %412 = vmatpush.msra.mxu0 0.0
    %413 = vmatpush.msra.mxu0 0.0
    %414 = vmatpush.msra.mxu0 %v116
    %415 = vmatpush.msra.mxu0 %v115
    %416 = vmatpush.msra.mxu0 %v114
    %417 = vmatpush.msra.mxu0 %v113
    %418 = vmatmul.f32.gmra.mxu0 %v400
    %v419 = vpop.f32.mrf.mxu0
    %v420 = vadd.f32 0.0, %v419
    %421 = vdwg.mxu0
    %v422 = vadd.f32 %v102, %v420
    %v423 = vxor.u32 %v422, 2147483648
    %v424 = vmul.f32 %v423, 1.442695
    %v425 = vpow.pop %v424
    %v426 = vadd.f32 %v425, 1.0
    %v427 = vrcp.pop %v426
    %v428 = vmul.f32 %v426, %v427
    %v429 = vsub.f32 1.0, %v428
    %v430 = vmul.f32 %v427, %v429
    %v431 = vadd.f32 %v427, %v430
    %vm432 = vweird.f32 %v426
    %vm433 = vweird.f32 %v427
    %vm434 = vmor %vm432, %vm433
    %v435 = vsel %vm434, %v427, %v431
    %v436 = vand.u32 2147483647, %v426
    %vm437 = vcmp.eq.f32.partialorder %v436, 8.507059e+37
    %v438 = vand.u32 %v426, 2147483648
    %v439 = vor.u32 1.1754944e-38, %v438
    %v440 = vsel %vm437, %v439, %v435
    %v441 = vmul.f32 1.0, %v440
    %v442 = vtanh.pop %v422
    %v443 = vmul.f32 %v441, %v383
    %445 = vrot.lane.b32.xlu0 %v442, 64
    %v446 = vpop.permute.xlu0 %445
    %v448 = vmul.f32 %v441, %v446
    %450 = vrot.lane.b32.xlu0 %v448, 32
    %v451 = vpop.permute.xlu0 %450
    %v453 = vadd.f32 %v443, %v451
    %v454 = vtanh.pop %v453
    %456 = vrot.lane.b32.xlu0 %v454, 64
    %v457 = vpop.permute.xlu0 %456
    %v459 = vmul.f32 %v441, %v457
    %vm460 = vcmp.eq.s32.totalorder %v117, 5
    %v461 = vsel %vm460, 1, 0
    %462 = vset.pattern.permute.xlu0 0
    %463 = vperm.xlu0 %462, %v461
    %v464 = vpop.permute.xlu0 %463
    %vm465 = vcmp.eq.s32.totalorder %v464, 1
    %v466 = vsel %vm465, %v459, %v396
    %468 = vrot.lane.b32.xlu0 %v459, 32
    %v469 = vpop.permute.xlu0 %468
    %v470 = vsel %vm118, %v469, 0
    %472 = vmatpush.msra.mxu0 0.0
    %473 = vmatpush.msra.mxu0 0.0
    %474 = vmatpush.msra.mxu0 0.0
    %475 = vmatpush.msra.mxu0 0.0
    %476 = vmatpush.msra.mxu0 0.0
    %477 = vmatpush.msra.mxu0 0.0
    %478 = vmatpush.msra.mxu0 0.0
    %479 = vmatpush.msra.mxu0 0.0
    %480 = vmatpush.msra.mxu0 0.0
    %481 = vmatpush.msra.mxu0 0.0
    %482 = vmatpush.msra.mxu0 0.0
    %483 = vmatpush.msra.mxu0 0.0
    %484 = vmatpush.msra.mxu0 %v116
    %485 = vmatpush.msra.mxu0 %v115
    %486 = vmatpush.msra.mxu0 %v114
    %487 = vmatpush.msra.mxu0 %v113
    %488 = vmatmul.f32.gmra.mxu0 %v470
    %v489 = vpop.f32.mrf.mxu0
    %v490 = vadd.f32 0.0, %v489
    %491 = vdwg.mxu0
    %v492 = vadd.f32 %v105, %v490
    %v493 = vxor.u32 %v492, 2147483648
    %v494 = vmul.f32 %v493, 1.442695
    %v495 = vpow.pop %v494
    %v496 = vadd.f32 %v495, 1.0
    %v497 = vrcp.pop %v496
    %v498 = vmul.f32 %v496, %v497
    %v499 = vsub.f32 1.0, %v498
    %v500 = vmul.f32 %v497, %v499
    %v501 = vadd.f32 %v497, %v500
    %vm502 = vweird.f32 %v496
    %vm503 = vweird.f32 %v497
    %vm504 = vmor %vm502, %vm503
    %v505 = vsel %vm504, %v497, %v501
    %v506 = vand.u32 2147483647, %v496
    %vm507 = vcmp.eq.f32.partialorder %v506, 8.507059e+37
    %v508 = vand.u32 %v496, 2147483648
    %v509 = vor.u32 1.1754944e-38, %v508
    %v510 = vsel %vm507, %v509, %v505
    %v511 = vmul.f32 1.0, %v510
    %v512 = vtanh.pop %v492
    %v513 = vmul.f32 %v511, %v453
    %515 = vrot.lane.b32.xlu0 %v512, 64
    %v516 = vpop.permute.xlu0 %515
    %v518 = vmul.f32 %v511, %v516
    %520 = vrot.lane.b32.xlu0 %v518, 32
    %v521 = vpop.permute.xlu0 %520
    %v523 = vadd.f32 %v513, %v521
    %v524 = vtanh.pop %v523
    %526 = vrot.lane.b32.xlu0 %v524, 64
    %v527 = vpop.permute.xlu0 %526
    %v529 = vmul.f32 %v511, %v527
    %vm530 = vcmp.eq.s32.totalorder %v117, 6
    %v531 = vsel %vm530, 1, 0
    %532 = vset.pattern.permute.xlu0 0
    %533 = vperm.xlu0 %532, %v531
    %v534 = vpop.permute.xlu0 %533
    %vm535 = vcmp.eq.s32.totalorder %v534, 1
    %v536 = vsel %vm535, %v529, %v466
    %538 = vrot.lane.b32.xlu0 %v529, 32
    %v539 = vpop.permute.xlu0 %538
    %v540 = vsel %vm118, %v539, 0
    %542 = vmatpush.msra.mxu0 0.0
    %543 = vmatpush.msra.mxu0 0.0
    %544 = vmatpush.msra.mxu0 0.0
    %545 = vmatpush.msra.mxu0 0.0
    %546 = vmatpush.msra.mxu0 0.0
    %547 = vmatpush.msra.mxu0 0.0
    %548 = vmatpush.msra.mxu0 0.0
    %549 = vmatpush.msra.mxu0 0.0
    %550 = vmatpush.msra.mxu0 0.0
    %551 = vmatpush.msra.mxu0 0.0
    %552 = vmatpush.msra.mxu0 0.0
    %553 = vmatpush.msra.mxu0 0.0
    %554 = vmatpush.msra.mxu0 %v116
    %555 = vmatpush.msra.mxu0 %v115
    %556 = vmatpush.msra.mxu0 %v114
    %557 = vmatpush.msra.mxu0 %v113
    %558 = vmatmul.f32.gmra.mxu0 %v540
    %v559 = vpop.f32.mrf.mxu0
    %v560 = vadd.f32 0.0, %v559
    %561 = vdwg.mxu0
    %v562 = vadd.f32 %v108, %v560
    %v563 = vxor.u32 %v562, 2147483648
    %v564 = vmul.f32 %v563, 1.442695
    %v565 = vpow.pop %v564
    %v566 = vadd.f32 %v565, 1.0
    %v567 = vrcp.pop %v566
    %v568 = vmul.f32 %v566, %v567
    %v569 = vsub.f32 1.0, %v568
    %v570 = vmul.f32 %v567, %v569
    %v571 = vadd.f32 %v567, %v570
    %vm572 = vweird.f32 %v566
    %vm573 = vweird.f32 %v567
    %vm574 = vmor %vm572, %vm573
    %v575 = vsel %vm574, %v567, %v571
    %v576 = vand.u32 2147483647, %v566
    %vm577 = vcmp.eq.f32.partialorder %v576, 8.507059e+37
    %v578 = vand.u32 %v566, 2147483648
    %v579 = vor.u32 1.1754944e-38, %v578
    %v580 = vsel %vm577, %v579, %v575
    %v581 = vmul.f32 1.0, %v580
    %v582 = vtanh.pop %v562
    %v583 = vmul.f32 %v581, %v523
    %585 = vrot.lane.b32.xlu0 %v582, 64
    %v586 = vpop.permute.xlu0 %585
    %v588 = vmul.f32 %v581, %v586
    %590 = vrot.lane.b32.xlu0 %v588, 32
    %v591 = vpop.permute.xlu0 %590
    %v593 = vadd.f32 %v583, %v591
    %v594 = vtanh.pop %v593
    %596 = vrot.lane.b32.xlu0 %v594, 64
    %v597 = vpop.permute.xlu0 %596
    %v599 = vmul.f32 %v581, %v597
    %vm600 = vcmp.eq.s32.totalorder %v117, 7
    %v601 = vsel %vm600, 1, 0
    %602 = vset.pattern.permute.xlu0 0
    %603 = vperm.xlu0 %602, %v601
    %v604 = vpop.permute.xlu0 %603
    %vm605 = vcmp.eq.s32.totalorder %v604, 1
    %v606 = vsel %vm605, %v599, %v536
    %608 = vrot.lane.b32.xlu0 %v599, 32
    %v609 = vpop.permute.xlu0 %608
    %v610 = vsel %vm118, %v609, 0
    %612 = vmatpush.msra.mxu0 0.0
    %613 = vmatpush.msra.mxu0 0.0
    %614 = vmatpush.msra.mxu0 0.0
    %615 = vmatpush.msra.mxu0 0.0
    %616 = vmatpush.msra.mxu0 0.0
    %617 = vmatpush.msra.mxu0 0.0
    %618 = vmatpush.msra.mxu0 0.0
    %619 = vmatpush.msra.mxu0 0.0
    %620 = vmatpush.msra.mxu0 0.0
    %621 = vmatpush.msra.mxu0 0.0
    %622 = vmatpush.msra.mxu0 0.0
    %623 = vmatpush.msra.mxu0 0.0
    %624 = vmatpush.msra.mxu0 %v116
    %625 = vmatpush.msra.mxu0 %v115
    %626 = vmatpush.msra.mxu0 %v114
    %627 = vmatpush.msra.mxu0 %v113
    %628 = vmatmul.f32.gmra.mxu0 %v610
    %v629 = vpop.f32.mrf.mxu0
    %v630 = vadd.f32 0.0, %v629
    %631 = vdwg.mxu0
    %v632 = vadd.f32 %v111, %v630
    %v633 = vxor.u32 %v632, 2147483648
    %v634 = vmul.f32 %v633, 1.442695
    %v635 = vpow.pop %v634
    %v636 = vadd.f32 %v635, 1.0
    %v637 = vrcp.pop %v636
    %v638 = vmul.f32 %v636, %v637
    %v639 = vsub.f32 1.0, %v638
    %v640 = vmul.f32 %v637, %v639
    %v641 = vadd.f32 %v637, %v640
    %vm642 = vweird.f32 %v636
    %vm643 = vweird.f32 %v637
    %vm644 = vmor %vm642, %vm643
    %v645 = vsel %vm644, %v637, %v641
    %v646 = vand.u32 2147483647, %v636
    %vm647 = vcmp.eq.f32.partialorder %v646, 8.507059e+37
    %v648 = vand.u32 %v636, 2147483648
    %v649 = vor.u32 1.1754944e-38, %v648
    %v650 = vsel %vm647, %v649, %v645
    %v651 = vmul.f32 1.0, %v650
    %v652 = vtanh.pop %v632
    %v653 = vmul.f32 %v651, %v593
    %655 = vrot.lane.b32.xlu0 %v652, 64
    %v656 = vpop.permute.xlu0 %655
    %v658 = vmul.f32 %v651, %v656
    %660 = vrot.lane.b32.xlu0 %v658, 32
    %v661 = vpop.permute.xlu0 %660
    %v663 = vadd.f32 %v653, %v661
    %v664 = vtanh.pop %v663
    %666 = vrot.lane.b32.xlu0 %v664, 64
    %v667 = vpop.permute.xlu0 %666
    %v669 = vmul.f32 %v651, %v667
    %vm670 = vcmp.eq.s32.totalorder %v117, 8
    %v671 = vsel %vm670, 1, 0
    %672 = vset.pattern.permute.xlu0 0
    %673 = vperm.xlu0 %672, %v671
    %v674 = vpop.permute.xlu0 %673
    %vm675 = vcmp.eq.s32.totalorder %v674, 1
    %v676 = vsel %vm675, %v669, %v606
    %v677 = vld [vmem:[%s5] sm:$0x1]
    %v679 = vperm.slane %v677, 0
    %680 = vrot.lane.b32.xlu0 %v679, 96
    %v681 = vpop.permute.xlu0 %680
    %v683 = vmul.f32 %v676, %v681
    %v684 = vld [vmem:[%s6] sm:$0x1]
    %v686 = vperm.slane %v684, 0
    %687 = vrot.lane.b32.xlu0 %v686, 96
    %v688 = vpop.permute.xlu0 %687
    %v690 = vadd.f32 %v683, %v688
    %v691 = vld [vmem:[%s7] sm:$0xff]
    %v692 = vld [vmem:[%s7 + $0x8] sm:$0xff]
    %v693 = vld [vmem:[%s7 + $0x10] sm:$0xff]
    %v694 = vld [vmem:[%s7 + $0x18] sm:$0xff]
    %v695 = vld [vmem:[%s8] sm:$0x1]
    %v697 = vperm.slane %v695, 0
    %700 = vrot.lane.b32.xlu0 %v690, 32
    %v701 = vpop.permute.xlu0 %700
    %v702 = vsel %vm118, %v701, 0
    %704 = vmatpush.msra.mxu0 0.0
    %705 = vmatpush.msra.mxu0 0.0
    %706 = vmatpush.msra.mxu0 0.0
    %707 = vmatpush.msra.mxu0 0.0
    %708 = vmatpush.msra.mxu0 0.0
    %709 = vmatpush.msra.mxu0 0.0
    %710 = vmatpush.msra.mxu0 0.0
    %711 = vmatpush.msra.mxu0 0.0
    %712 = vmatpush.msra.mxu0 0.0
    %713 = vmatpush.msra.mxu0 0.0
    %714 = vmatpush.msra.mxu0 0.0
    %715 = vmatpush.msra.mxu0 0.0
    %716 = vmatpush.msra.mxu0 %v694
    %717 = vmatpush.msra.mxu0 %v693
    %718 = vmatpush.msra.mxu0 %v692
    %719 = vmatpush.msra.mxu0 %v691
    %720 = vmatmul.f32.gmra.mxu0 %v702
    %v721 = vpop.f32.mrf.mxu0
    %v722 = vadd.f32 %v697, %v721
    %723 = vdwg.mxu0
    %724 = vst [vmem:[#allocation2] sm:$0xff] %v722
    // Predicated region
    $region38: #{tpu_custom_call.1} parent=1 // pred_check
      _
    $region39: #{tpu_custom_call.1} parent=1 // pred_check_branch
      %726 = sbr.rel (0) target = $region41
    $region40: #{tpu_custom_call.1} parent=1 // pred_region
      %728 = vsyncadd [#allocation3], 0
      %s730 = sshll.u32 [#allocation2], 4
      %s731 = int_to_ptr.vmem [resolvable:$true] %s730
      %s732 = sshll.u32 %s9, 4
      %s733 = int_to_ptr.hbm [resolvable:$true] %s732
      %735 = dma.vmem_to_hbm [thread:$0]  %s731, 128, %s733, [#allocation3]
    $region41: #{tpu_custom_call.1} parent=1 // pred_fallthru
      _
    // Predicated region
    $region42: #{tpu_custom_call.1} parent=1 // pred_check
      _
    $region43: #{tpu_custom_call.1} parent=1 // pred_check_branch
      %737 = sbr.rel (0) target = $region45
    $region44: #{tpu_custom_call.1} parent=1 // pred_region
      %739 = dma.done [#allocation3], 128
    $region45: #{tpu_custom_call.1} parent=1 // pred_fallthru
      _
    %740 = vsyncpa [#allocation3], 1

</llo_original>
